<compile_context>
chip_gen: v7x
topology: tpu7x:2x2x1
jax: 0.10.0
libtpu: 0.0.40
codegen_flags: <defaults>
</compile_context>

<pallas_src>
import functools
import math

import jax
import jax.numpy as jnp
from jax.experimental import pallas as pl
from jax.experimental.pallas import tpu as pltpu

D_MODEL = 32
MAX_LEN = 512


# ---------------------------------------------------------------------------
# Kernels
# ---------------------------------------------------------------------------
def _add_pe_kernel(x_ref, pe_ref, out_ref):
    """Eval-mode forward: out = x + pe (identically shaped, native dtype)."""
    out_ref[...] = x_ref[...] + pe_ref[...]


def _add_pe_dropout_kernel(seed_ref, x_ref, pe_ref, out_ref, *, keep_prob):
    """Training-mode forward: out = dropout(x + pe, p = 1 - keep_prob).

    Inverted dropout implemented with the on-chip PRNG so the whole forward
    stays one kernel (addresses the 'dropout silently dropped' concern).
    seed_ref lives in SMEM via scalar prefetch; seed varies per grid tile.
    """
    pltpu.prng_seed(seed_ref[0] + pl.program_id(0))
    bits = pltpu.bitcast(pltpu.prng_random_bits(out_ref.shape), jnp.uint32)
    u01 = (bits >> 8).astype(jnp.float32) * (1.0 / (1 << 24))      # [0, 1)
    y = x_ref[...] + pe_ref[...]
    scale = jnp.asarray(1.0 / keep_prob, y.dtype)
    out_ref[...] = jnp.where(u01 < keep_prob, y * scale, jnp.zeros_like(y))


# ---------------------------------------------------------------------------
# Buffer construction (mirrors the PyTorch __init__ registered buffer)
# ---------------------------------------------------------------------------
def make_sinusoidal_table(max_len=MAX_LEN, d_model=D_MODEL, dtype=jnp.float32):
    position = jnp.arange(max_len, dtype=jnp.float32)[:, None]            # (max_len, 1)
    div_term = jnp.exp(jnp.arange(0, d_model, 2, dtype=jnp.float32)
                       * (-math.log(10000.0) / d_model))                  # (d_model/2,)
    angles = position * div_term                                          # (max_len, d/2)
    pe = jnp.zeros((max_len, d_model), jnp.float32)
    pe = pe.at[:, 0::2].set(jnp.sin(angles))
    pe = pe.at[:, 1::2].set(jnp.cos(angles))
    return pe.astype(dtype)                                               # (max_len, D)


# ---------------------------------------------------------------------------
# Tiling helper
# ---------------------------------------------------------------------------
def _pick_row_tile(rows, itemsize, max_tile_bytes=2 << 20):
    """Largest row tile (multiple of 8, dividing `rows`) under max_tile_bytes."""
    if rows % 8 != 0:
        return rows                    # single full-dims block — always legal
    max_rows = max(8, (max_tile_bytes // (128 * itemsize)) // 8 * 8)
    if rows <= max_rows:
        return rows
    t = max_rows
    while t >= 8:
        if rows % t == 0:
            return t
        t -= 8
    return rows


# ---------------------------------------------------------------------------
# Wrapper
# ---------------------------------------------------------------------------
def positional_encoding(x, pe_table, *, dropout_p=0.1, train=False, seed=0,
                        donate_x=False):
    """x: (L, B, D); pe_table: (max_len, D). Returns dropout(x + pe[:L])."""
    L, B, D = x.shape
    assert L <= pe_table.shape[0], "sequence longer than the pe table"

    # Pre-broadcast pe to x's shape (cheap; reused per B under jit) so the
    # kernel is a pure aligned add — no sublane-axis broadcast in-kernel.
    pe = jnp.broadcast_to(pe_table[:L].astype(x.dtype)[:, None, :], (L, B, D))

    # Lane-dense slab: last dim a multiple of 128 whenever possible.
    N = L * B * D
    if N % 128 == 0:
        slab = (N // 128, 128)
    else:
        slab = (L, B * D)              # fallback: single full-dims block below
    rows, cols = slab
    x2 = x.reshape(slab)
    pe2 = pe.reshape(slab)

    row_tile = _pick_row_tile(rows, x.dtype.itemsize) if cols == 128 else rows
    grid = (rows // row_tile,)
    blk = (row_tile, cols)

    out_shape = jax.ShapeDtypeStruct(slab, x.dtype)
    cparams = pltpu.CompilerParams(dimension_semantics=("parallel",))

    if (not train) or dropout_p == 0.0:
        out = pl.pallas_call(
            _add_pe_kernel,
            out_shape=out_shape,
            grid=grid,
            in_specs=[pl.BlockSpec(blk, lambda i: (i, 0)),
                      pl.BlockSpec(blk, lambda i: (i, 0))],
            out_specs=pl.BlockSpec(blk, lambda i: (i, 0)),
            input_output_aliases=({0: 0} if donate_x else {}),
            compiler_params=cparams,
        )(x2, pe2)
    else:
        seeds = jnp.asarray([seed], jnp.int32)
        out = pl.pallas_call(
            functools.partial(_add_pe_dropout_kernel,
                              keep_prob=1.0 - float(dropout_p)),
            out_shape=out_shape,
            grid_spec=pltpu.PrefetchScalarGridSpec(
                num_scalar_prefetch=1,
                grid=grid,
                in_specs=[pl.BlockSpec(blk, lambda i, s: (i, 0)),
                          pl.BlockSpec(blk, lambda i, s: (i, 0))],
                out_specs=pl.BlockSpec(blk, lambda i, s: (i, 0))),
            compiler_params=cparams,
        )(seeds, x2, pe2)

    return out.reshape(L, B, D)


# ---------------------------------------------------------------------------
if __name__ == "__main__":
    key = jax.random.PRNGKey(0)

    # x: [sequence length, batch size, embed dim]
    L, B, D = 8, 2, D_MODEL
    x = jax.random.normal(key, (L, B, D), jnp.float32)

    pe_table = make_sinusoidal_table(dtype=x.dtype)

    fwd = jax.jit(lambda a: positional_encoding(a, pe_table))   # eval-mode forward
    out = fwd(x)
    jax.block_until_ready(out)

    # Pure-JAX reference of the PyTorch forward (dropout in eval mode).
    ref = x + pe_table[:L][:, None, :]
    assert out.shape == (L, B, D)
    assert jnp.allclose(out, ref, atol=1e-6, rtol=1e-6)
    print("KERNEL_OK")
</pallas_src>

<mosaic_0001>
module attributes {stable_mosaic.version = 11 : i64} {
  func.func @_add_pe_kernel(%arg0: i32, %arg1: memref<4x128xf32, #tpu.memory_space<vmem>>, %arg2: memref<4x128xf32, #tpu.memory_space<vmem>>, %arg3: memref<4x128xf32, #tpu.memory_space<vmem>>) attributes {dimension_semantics = [#tpu.dimension_semantics<parallel>], iteration_bounds = array<i64: 1>, scalar_prefetch = 0 : i64, scratch_operands = 0 : i64, tpu.core_type = #tpu.core_type<tc>, window_params = [{transform_indices = @transform_0, window_bounds = array<i64: 4, 128>}, {transform_indices = @transform_1, window_bounds = array<i64: 4, 128>}, {transform_indices = @transform_2, window_bounds = array<i64: 4, 128>}]} {
    %c0 = arith.constant 0 : index
    %c0_0 = arith.constant 0 : index
    %0 = vector.load %arg1[%c0, %c0_0] : memref<4x128xf32, #tpu.memory_space<vmem>>, vector<4x128xf32>
    %c0_1 = arith.constant 0 : index
    %c0_2 = arith.constant 0 : index
    %1 = vector.load %arg2[%c0_1, %c0_2] : memref<4x128xf32, #tpu.memory_space<vmem>>, vector<4x128xf32>
    %2 = arith.addf %0, %1 : vector<4x128xf32>
    %c0_3 = arith.constant 0 : index
    %c0_4 = arith.constant 0 : index
    %3 = vector.load %arg3[%c0_3, %c0_4] : memref<4x128xf32, #tpu.memory_space<vmem>>, vector<4x128xf32>
    tpu.vector_store %arg3[%c0_3, %c0_4], %2 {strides = array<i32>} : memref<4x128xf32, #tpu.memory_space<vmem>>, vector<4x128xf32>,
    return
  }
  func.func @transform_0(%arg0: i32) -> (i32, i32) {
    %c0_i32 = arith.constant 0 : i32
    %c0_i32_0 = arith.constant 0 : i32
    return %arg0, %c0_i32 : i32, i32
  }
  func.func @transform_1(%arg0: i32) -> (i32, i32) {
    %c0_i32 = arith.constant 0 : i32
    %c0_i32_0 = arith.constant 0 : i32
    return %arg0, %c0_i32 : i32, i32
  }
  func.func @transform_2(%arg0: i32) -> (i32, i32) {
    %c0_i32 = arith.constant 0 : i32
    %c0_i32_0 = arith.constant 0 : i32
    return %arg0, %c0_i32 : i32, i32
  }
}

</mosaic_0001>

<llo_original>
// kernel: _lambda_.1
$region0: #{_lambda_.1}
  #allocation0 [shape = 'u32[]', space=smem, size = 0x4, offset = 0x4, fixed_abs, tag = 'smem constant byte address 0x4 - core index']
  #allocation1 [shape = 'u32[144,128]{1,0:T(1,128)}', space=vmem, size = 0x12000, scoped, tag = 'internal scratch']
  %s0 = inlined_call_operand.vmem [shape: f32[4,128], index: 0, kind: input, shape index: {}]
  %s1 = inlined_call_operand.vmem [shape: f32[4,128], index: 1, kind: input, shape index: {}]
  %s2 = inlined_call_operand.vmem [shape: f32[4,128], index: 2, kind: output, shape index: {}]
  %s3 = sld [smem:[#allocation0]]
  $region18: #{_lambda_.1} parent=0
    _
  %s5 = ssub.s32 1, %s3
  %s6 = scalar_select 0, %s5, %s3
  // Predicated region
  $region2: #{_lambda_.1} parent=0 // pred_check
    _
  $region3: #{_lambda_.1} parent=0 // pred_check_branch
    %8 = sbr.rel (0) target = $region5
  $region4: #{_lambda_.1} parent=0 // pred_region
    _
  $region5: #{_lambda_.1} parent=0 // pred_fallthru
    _
  // Predicated region
  $region6: #{_lambda_.1} parent=0 // pred_check
    _
  $region7: #{_lambda_.1} parent=0 // pred_check_branch
    %10 = sbr.rel (0) target = $region9
  $region8: #{_lambda_.1} parent=0 // pred_region
    _
  $region9: #{_lambda_.1} parent=0 // pred_fallthru
    _
  %v11 = vld [vmem:[%s0] sm:$0xf]
  %v12 = vld [vmem:[%s1] sm:$0xf]
  %v13 = vadd.f32 %v11, %v12
  %14 = vst [vmem:[%s2] sm:$0xf] %v13
  // Predicated region
  $region10: #{_lambda_.1} parent=0 // pred_check
    _
  $region11: #{_lambda_.1} parent=0 // pred_check_branch
    %16 = sbr.rel (0) target = $region13
  $region12: #{_lambda_.1} parent=0 // pred_region
    _
  $region13: #{_lambda_.1} parent=0 // pred_fallthru
    _
  // Predicated region
  $region14: #{_lambda_.1} parent=0 // pred_check
    _
  $region15: #{_lambda_.1} parent=0 // pred_check_branch
    %18 = sbr.rel (0) target = $region17
  $region16: #{_lambda_.1} parent=0 // pred_region
    _
  $region17: #{_lambda_.1} parent=0 // pred_fallthru
    _

</llo_original>
